<compile_context>
chip_gen: v5e
topology: v5e:2x2
jax: 0.10.0
libtpu: 0.0.40
codegen_flags: <defaults>
</compile_context>

<pallas_src>
import functools

import jax
import jax.numpy as jnp
from jax.experimental import pallas as pl
from jax.experimental.pallas import tpu as pltpu


_MXU_PASS = 256  # v6e/v7x MXU tile edge (128 on v5e); only used for a static
                 # matmul-order cost comparison, so pessimism on v5e is fine.


def _interp_matrix(out_size: int, in_size: int) -> jnp.ndarray:
    """Row-stochastic (out_size, in_size) matrix implementing 1-D bilinear
    interpolation with align_corners=True (PyTorch convention), in f32."""
    if out_size == 1:
        return jnp.zeros((1, in_size), jnp.float32).at[0, 0].set(1.0)
    coords = jnp.arange(out_size, dtype=jnp.float32) * (in_size - 1) / (out_size - 1)
    i0 = jnp.clip(jnp.floor(coords).astype(jnp.int32), 0, in_size - 1)
    i1 = jnp.clip(i0 + 1, 0, in_size - 1)
    frac = coords - i0.astype(jnp.float32)
    oh0 = jax.nn.one_hot(i0, in_size, dtype=jnp.float32)
    oh1 = jax.nn.one_hot(i1, in_size, dtype=jnp.float32)
    return (1.0 - frac)[:, None] * oh0 + frac[:, None] * oh1


def _full_sum(v):
    """(R, C) -> (1, 1) full reduction via two single-axis reduces."""
    return jnp.sum(jnp.sum(v, axis=1, keepdims=True), axis=0, keepdims=True)


def _silog_kernel(*refs, bt, height_first, do_interp, compute_dtype):
    """Per-grid-step refs:
      if do_interp: x_ref (Bt,1,Hin,Win), wh_ref (Ht,Hin), wwt_ref (Win,Wt),
                    t_ref (Bt,Ht,Wt), mean_ref (1,1,1), m2_ref (1,1,1)
      else:         x_ref (Bt,1,Ht,Wt),  t_ref (Bt,Ht,Wt), mean_ref, m2_ref
    Outputs are the per-tile mean of g and the shifted sum of squares (M2).
    """
    if do_interp:
        x_ref, wh_ref, wwt_ref, t_ref, mean_ref, m2_ref = refs
        wh = wh_ref[...]       # (Ht, Hin)  native/compute dtype
        ww_t = wwt_ref[...]    # (Win, Wt)
    else:
        x_ref, t_ref, mean_ref, m2_ref = refs

    ht, wt = t_ref.shape[-2:]
    c_img = float(ht * wt)
    inv_pix = 1.0 / c_img

    means = []
    m2s = []
    # Bt is small and static -> unrolled loop; each iteration is two tiny MXU
    # matmuls plus one log per pixel.
    for b in range(bt):
        xb = x_ref[b, 0]                                      # (Hin, Win) native
        if do_interp:
            if height_first:
                tmp = jnp.dot(wh, xb, preferred_element_type=jnp.float32)
                tmp = tmp.astype(compute_dtype)
                pred = jnp.dot(tmp, ww_t, preferred_element_type=jnp.float32)
            else:
                tmp = jnp.dot(xb, ww_t, preferred_element_type=jnp.float32)
                tmp = tmp.astype(compute_dtype)
                pred = jnp.dot(wh, tmp, preferred_element_type=jnp.float32)
        else:
            pred = xb.astype(jnp.float32)                     # (Ht, Wt)

        tb = t_ref[b].astype(jnp.float32)                     # (Ht, Wt)
        # NOTE: like the PyTorch mask=None path, non-positive depths give
        # NaN/-inf (the mask path is what normally excludes them).
        g = jnp.log(pred / tb)                                # 1 log per pixel

        mu = _full_sum(g) * inv_pix                           # (1,1) image mean
        d = g - mu
        m2 = _full_sum(d * d)                                 # (1,1) shifted SSQ
        means.append(mu)
        m2s.append(m2)

    mean_tile = sum(means) * (1.0 / bt)
    m2_tile = sum(m2s)
    # Chan combine of the equal-count per-image stats into tile stats.
    for mu in means:
        dmu = mu - mean_tile
        m2_tile = m2_tile + c_img * (dmu * dmu)

    mean_ref[0] = mean_tile
    m2_ref[0] = m2_tile


def _pad(x: int) -> int:
    return -(-x // _MXU_PASS) * _MXU_PASS


def _pick_batch_tile(n, per_image_bytes, *, budget_bytes=6 << 20, max_bt=8):
    """Largest divisor of n (<= max_bt) whose double-buffered tile fits the
    VMEM budget; falls back to 1."""
    for cand in range(min(n, max_bt), 0, -1):
        if n % cand == 0 and 2 * cand * per_image_bytes <= budget_bytes:
            return cand
    return 1


@functools.partial(jax.jit, static_argnames=("interpolate",))
def silog_loss(input_nchw, target_nhw, interpolate=True):
    # TODO(synk): the `mask is not None` path uses boolean fancy indexing
    # (dynamic shapes); only mask=None semantics are implemented.
    n, c, hin, win = input_nchw.shape
    assert c == 1, "SILogLoss expects a single-channel depth prediction"
    ht, wt = target_nhw.shape[-2:]
    assert n * ht * wt > 1, "variance needs at least two elements"

    do_interp = bool(interpolate) and (hin, win) != (ht, wt)
    if not do_interp:
        assert (hin, win) == (ht, wt), "without interpolation shapes must match"
    compute_dtype = input_nchw.dtype

    per_image_bytes = (hin * win * input_nchw.dtype.itemsize
                       + ht * wt * target_nhw.dtype.itemsize)
    bt = _pick_batch_tile(n, per_image_bytes)
    num_tiles = n // bt

    # Static matmul-order choice using MXU-pass-padded dims (the real cost is
    # vmatmul pass count on padded tiles, not raw FLOPs).
    ph_in, pw_in, ph_t, pw_t = _pad(hin), _pad(win), _pad(ht), _pad(wt)
    cost_h_first = ph_t * ph_in * pw_in + ph_t * pw_in * pw_t
    cost_w_first = ph_in * pw_in * pw_t + ph_t * ph_in * pw_t
    height_first = cost_h_first <= cost_w_first

    x_spec = pl.BlockSpec((bt, 1, hin, win), lambda i: (i, 0, 0, 0))
    t_spec = pl.BlockSpec((bt, ht, wt), lambda i: (i, 0, 0))
    out_specs = (
        pl.BlockSpec((1, 1, 1), lambda i: (i, 0, 0)),
        pl.BlockSpec((1, 1, 1), lambda i: (i, 0, 0)),
    )
    out_shape = (
        jax.ShapeDtypeStruct((num_tiles, 1, 1), jnp.float32),
        jax.ShapeDtypeStruct((num_tiles, 1, 1), jnp.float32),
    )

    kernel = functools.partial(
        _silog_kernel, bt=bt, height_first=height_first,
        do_interp=do_interp, compute_dtype=compute_dtype)

    if do_interp:
        # Interp matrices in the input's native dtype so the MXU operands stay
        # bf16 when the prediction is bf16 (f32 accumulation via
        # preferred_element_type).  Constant index_map -> resident in VMEM.
        wh = _interp_matrix(ht, hin).astype(compute_dtype)        # (Ht, Hin)
        ww_t = _interp_matrix(wt, win).T.astype(compute_dtype)    # (Win, Wt)
        in_specs = [
            x_spec,
            pl.BlockSpec((ht, hin), lambda i: (0, 0)),
            pl.BlockSpec((win, wt), lambda i: (0, 0)),
            t_spec,
        ]
        args = (input_nchw, wh, ww_t, target_nhw)
    else:
        in_specs = [x_spec, t_spec]
        args = (input_nchw, target_nhw)

    tile_mean, tile_m2 = pl.pallas_call(
        kernel,
        out_shape=out_shape,
        grid_spec=pltpu.PrefetchScalarGridSpec(
            num_scalar_prefetch=0,
            grid=(num_tiles,),
            in_specs=in_specs,
            out_specs=out_specs,
        ),
        compiler_params=pltpu.CompilerParams(
            # Each step writes its own (mean, M2) block -> batch-tile axis is
            # parallel (shards across both v7x TensorCores).
            dimension_semantics=("parallel",),
            # Bt is chosen under a ~6 MiB double-buffered tile budget; 32 MiB
            # scoped VMEM leaves ample headroom even on v7x (64 MiB physical).
            vmem_limit_bytes=32 * 1024 * 1024,
        ),
    )(*args)

    # Tiny cross-tile combine (Chan's formula; all tiles have equal counts).
    c_tile = jnp.float32(bt * ht * wt)
    n_total = jnp.float32(n * ht * wt)
    mean_total = jnp.mean(tile_mean)
    m2_total = jnp.sum(tile_m2) + c_tile * jnp.sum((tile_mean - mean_total) ** 2)
    var = m2_total / (n_total - 1.0)            # torch.var default: unbiased
    dg = var + 0.15 * mean_total * mean_total
    return 10.0 * jnp.sqrt(dg)


if __name__ == "__main__":
    key = jax.random.PRNGKey(0)
    k_in, k_tgt = jax.random.split(key)

    # Small shapes: prediction at 8x8, ground-truth depth at 16x16 (positive).
    pred = jax.random.uniform(k_in, (2, 1, 8, 8), jnp.float32,
                              minval=0.5, maxval=2.0)
    target = jax.random.uniform(k_tgt, (2, 16, 16), jnp.float32,
                                minval=0.5, maxval=2.0)

    loss = silog_loss(pred, target, interpolate=True)
    jax.block_until_ready(loss)
    print("KERNEL_OK")
</pallas_src>

<mosaic_0001>
module attributes {stable_mosaic.version = 11 : i64} {
  func.func @_silog_kernel(%arg0: i32, %arg1: memref<2x1x8x8xf32, #tpu.memory_space<vmem>>, %arg2: memref<16x8xf32, #tpu.memory_space<vmem>>, %arg3: memref<8x16xf32, #tpu.memory_space<vmem>>, %arg4: memref<2x16x16xf32, #tpu.memory_space<vmem>>, %arg5: memref<1x1x1xf32, #tpu.memory_space<vmem>>, %arg6: memref<1x1x1xf32, #tpu.memory_space<vmem>>) attributes {dimension_semantics = [#tpu.dimension_semantics<parallel>], iteration_bounds = array<i64: 1>, scalar_prefetch = 0 : i64, scratch_operands = 0 : i64, tpu.core_type = #tpu.core_type<tc>, window_params = [{transform_indices = @transform_0, window_bounds = array<i64: 2, 1, 8, 8>}, {pipeline_mode = #tpu.pipeline_mode<synchronous>, transform_indices = @transform_1, window_bounds = array<i64: 16, 8>}, {pipeline_mode = #tpu.pipeline_mode<synchronous>, transform_indices = @transform_2, window_bounds = array<i64: 8, 16>}, {transform_indices = @transform_3, window_bounds = array<i64: 2, 16, 16>}, {transform_indices = @transform_4, window_bounds = array<i64: 1, 1, 1>}, {transform_indices = @transform_5, window_bounds = array<i64: 1, 1, 1>}]} {
    %c0 = arith.constant 0 : index
    %c0_0 = arith.constant 0 : index
    %0 = vector.load %arg2[%c0, %c0_0] : memref<16x8xf32, #tpu.memory_space<vmem>>, vector<16x8xf32>
    %c0_1 = arith.constant 0 : index
    %c0_2 = arith.constant 0 : index
    %1 = vector.load %arg3[%c0_1, %c0_2] : memref<8x16xf32, #tpu.memory_space<vmem>>, vector<8x16xf32>
    %c0_3 = arith.constant 0 : index
    %c0_4 = arith.constant 0 : index
    %c0_5 = arith.constant 0 : index
    %c0_6 = arith.constant 0 : index
    %2 = vector.load %arg1[%c0_3, %c0_4, %c0_5, %c0_6] : memref<2x1x8x8xf32, #tpu.memory_space<vmem>>, vector<1x1x8x8xf32>
    %3 = vector.shape_cast %2 : vector<1x1x8x8xf32> to vector<8x8xf32>
    %cst = arith.constant dense<0.000000e+00> : vector<16x8xf32>
    %4 = tpu.matmul %0, %3, %cst {dimension_numbers = #tpu.dot_dimension_numbers<[1], [0], [0], [1], [0, 0, 1, 1], [], []>} : vector<16x8xf32>, vector<8x8xf32>, vector<16x8xf32> -> vector<16x8xf32>
    %cst_7 = arith.constant dense<0.000000e+00> : vector<16x16xf32>
    %5 = tpu.matmul %4, %1, %cst_7 {dimension_numbers = #tpu.dot_dimension_numbers<[1], [0], [0], [1], [0, 0, 1, 1], [], []>} : vector<16x8xf32>, vector<8x16xf32>, vector<16x16xf32> -> vector<16x16xf32>
    %c0_8 = arith.constant 0 : index
    %c0_9 = arith.constant 0 : index
    %c0_10 = arith.constant 0 : index
    %6 = vector.load %arg4[%c0_8, %c0_9, %c0_10] : memref<2x16x16xf32, #tpu.memory_space<vmem>>, vector<1x16x16xf32>
    %7 = vector.shape_cast %6 : vector<1x16x16xf32> to vector<16x16xf32>
    %8 = arith.divf %5, %7 : vector<16x16xf32>
    %9 = math.log %8 : vector<16x16xf32>
    %cst_11 = arith.constant dense<0.000000e+00> : vector<16xf32>
    %10 = vector.multi_reduction <add>, %9, %cst_11 [1] : vector<16x16xf32> to vector<16xf32>
    %11 = vector.shape_cast %10 : vector<16xf32> to vector<16x1xf32>
    %cst_12 = arith.constant dense<0.000000e+00> : vector<1xf32>
    %12 = vector.multi_reduction <add>, %11, %cst_12 [0] : vector<16x1xf32> to vector<1xf32>
    %13 = vector.shape_cast %12 : vector<1xf32> to vector<1x1xf32>
    %cst_13 = arith.constant 3.906250e-03 : f32
    %14 = vector.broadcast %cst_13 : f32 to vector<1x1xf32>
    %15 = arith.mulf %13, %14 : vector<1x1xf32>
    %16 = vector.broadcast %15 : vector<1x1xf32> to vector<16x16xf32>
    %17 = arith.subf %9, %16 : vector<16x16xf32>
    %18 = arith.mulf %17, %17 : vector<16x16xf32>
    %cst_14 = arith.constant dense<0.000000e+00> : vector<16xf32>
    %19 = vector.multi_reduction <add>, %18, %cst_14 [1] : vector<16x16xf32> to vector<16xf32>
    %20 = vector.shape_cast %19 : vector<16xf32> to vector<16x1xf32>
    %cst_15 = arith.constant dense<0.000000e+00> : vector<1xf32>
    %21 = vector.multi_reduction <add>, %20, %cst_15 [0] : vector<16x1xf32> to vector<1xf32>
    %22 = vector.shape_cast %21 : vector<1xf32> to vector<1x1xf32>
    %c1 = arith.constant 1 : index
    %c0_16 = arith.constant 0 : index
    %c0_17 = arith.constant 0 : index
    %c0_18 = arith.constant 0 : index
    %23 = vector.load %arg1[%c1, %c0_16, %c0_17, %c0_18] : memref<2x1x8x8xf32, #tpu.memory_space<vmem>>, vector<1x1x8x8xf32>
    %24 = vector.shape_cast %23 : vector<1x1x8x8xf32> to vector<8x8xf32>
    %cst_19 = arith.constant dense<0.000000e+00> : vector<16x8xf32>
    %25 = tpu.matmul %0, %24, %cst_19 {dimension_numbers = #tpu.dot_dimension_numbers<[1], [0], [0], [1], [0, 0, 1, 1], [], []>} : vector<16x8xf32>, vector<8x8xf32>, vector<16x8xf32> -> vector<16x8xf32>
    %cst_20 = arith.constant dense<0.000000e+00> : vector<16x16xf32>
    %26 = tpu.matmul %25, %1, %cst_20 {dimension_numbers = #tpu.dot_dimension_numbers<[1], [0], [0], [1], [0, 0, 1, 1], [], []>} : vector<16x8xf32>, vector<8x16xf32>, vector<16x16xf32> -> vector<16x16xf32>
    %c1_21 = arith.constant 1 : index
    %c0_22 = arith.constant 0 : index
    %c0_23 = arith.constant 0 : index
    %27 = vector.load %arg4[%c1_21, %c0_22, %c0_23] : memref<2x16x16xf32, #tpu.memory_space<vmem>>, vector<1x16x16xf32>
    %28 = vector.shape_cast %27 : vector<1x16x16xf32> to vector<16x16xf32>
    %29 = arith.divf %26, %28 : vector<16x16xf32>
    %30 = math.log %29 : vector<16x16xf32>
    %cst_24 = arith.constant dense<0.000000e+00> : vector<16xf32>
    %31 = vector.multi_reduction <add>, %30, %cst_24 [1] : vector<16x16xf32> to vector<16xf32>
    %32 = vector.shape_cast %31 : vector<16xf32> to vector<16x1xf32>
    %cst_25 = arith.constant dense<0.000000e+00> : vector<1xf32>
    %33 = vector.multi_reduction <add>, %32, %cst_25 [0] : vector<16x1xf32> to vector<1xf32>
    %34 = vector.shape_cast %33 : vector<1xf32> to vector<1x1xf32>
    %cst_26 = arith.constant 3.906250e-03 : f32
    %35 = vector.broadcast %cst_26 : f32 to vector<1x1xf32>
    %36 = arith.mulf %34, %35 : vector<1x1xf32>
    %37 = vector.broadcast %36 : vector<1x1xf32> to vector<16x16xf32>
    %38 = arith.subf %30, %37 : vector<16x16xf32>
    %39 = arith.mulf %38, %38 : vector<16x16xf32>
    %cst_27 = arith.constant dense<0.000000e+00> : vector<16xf32>
    %40 = vector.multi_reduction <add>, %39, %cst_27 [1] : vector<16x16xf32> to vector<16xf32>
    %41 = vector.shape_cast %40 : vector<16xf32> to vector<16x1xf32>
    %cst_28 = arith.constant dense<0.000000e+00> : vector<1xf32>
    %42 = vector.multi_reduction <add>, %41, %cst_28 [0] : vector<16x1xf32> to vector<1xf32>
    %43 = vector.shape_cast %42 : vector<1xf32> to vector<1x1xf32>
    %cst_29 = arith.constant 0.000000e+00 : f32
    %44 = vector.broadcast %cst_29 : f32 to vector<1x1xf32>
    %45 = arith.addf %44, %15 : vector<1x1xf32>
    %46 = arith.addf %45, %36 : vector<1x1xf32>
    %cst_30 = arith.constant 5.000000e-01 : f32
    %47 = vector.broadcast %cst_30 : f32 to vector<1x1xf32>
    %48 = arith.mulf %46, %47 : vector<1x1xf32>
    %cst_31 = arith.constant 0.000000e+00 : f32
    %49 = vector.broadcast %cst_31 : f32 to vector<1x1xf32>
    %50 = arith.addf %49, %22 : vector<1x1xf32>
    %51 = arith.addf %50, %43 : vector<1x1xf32>
    %52 = arith.subf %15, %48 : vector<1x1xf32>
    %53 = arith.mulf %52, %52 : vector<1x1xf32>
    %cst_32 = arith.constant 2.560000e+02 : f32
    %54 = vector.broadcast %cst_32 : f32 to vector<1x1xf32>
    %55 = arith.mulf %54, %53 : vector<1x1xf32>
    %56 = arith.addf %51, %55 : vector<1x1xf32>
    %57 = arith.subf %36, %48 : vector<1x1xf32>
    %58 = arith.mulf %57, %57 : vector<1x1xf32>
    %cst_33 = arith.constant 2.560000e+02 : f32
    %59 = vector.broadcast %cst_33 : f32 to vector<1x1xf32>
    %60 = arith.mulf %59, %58 : vector<1x1xf32>
    %61 = arith.addf %56, %60 : vector<1x1xf32>
    %c0_34 = arith.constant 0 : index
    %c0_35 = arith.constant 0 : index
    %c0_36 = arith.constant 0 : index
    %62 = vector.load %arg5[%c0_34, %c0_35, %c0_36] : memref<1x1x1xf32, #tpu.memory_space<vmem>>, vector<1x1x1xf32>
    %63 = vector.shape_cast %62 : vector<1x1x1xf32> to vector<1x1xf32>
    %64 = vector.shape_cast %48 : vector<1x1xf32> to vector<1x1x1xf32>
    tpu.vector_store %arg5[%c0_34, %c0_35, %c0_36], %64 {strides = array<i32>} : memref<1x1x1xf32, #tpu.memory_space<vmem>>, vector<1x1x1xf32>,
    %c0_37 = arith.constant 0 : index
    %c0_38 = arith.constant 0 : index
    %c0_39 = arith.constant 0 : index
    %65 = vector.load %arg6[%c0_37, %c0_38, %c0_39] : memref<1x1x1xf32, #tpu.memory_space<vmem>>, vector<1x1x1xf32>
    %66 = vector.shape_cast %65 : vector<1x1x1xf32> to vector<1x1xf32>
    %67 = vector.shape_cast %61 : vector<1x1xf32> to vector<1x1x1xf32>
    tpu.vector_store %arg6[%c0_37, %c0_38, %c0_39], %67 {strides = array<i32>} : memref<1x1x1xf32, #tpu.memory_space<vmem>>, vector<1x1x1xf32>,
    return
  }
  func.func @transform_0(%arg0: i32) -> (i32, i32, i32, i32) {
    %c0_i32 = arith.constant 0 : i32
    %c0_i32_0 = arith.constant 0 : i32
    %c0_i32_1 = arith.constant 0 : i32
    %c0_i32_2 = arith.constant 0 : i32
    return %arg0, %c0_i32, %c0_i32_0, %c0_i32_1 : i32, i32, i32, i32
  }
  func.func @transform_1(%arg0: i32) -> (i32, i32) {
    %c0_i32 = arith.constant 0 : i32
    %c0_i32_0 = arith.constant 0 : i32
    %c0_i32_1 = arith.constant 0 : i32
    return %c0_i32, %c0_i32_0 : i32, i32
  }
  func.func @transform_2(%arg0: i32) -> (i32, i32) {
    %c0_i32 = arith.constant 0 : i32
    %c0_i32_0 = arith.constant 0 : i32
    %c0_i32_1 = arith.constant 0 : i32
    return %c0_i32, %c0_i32_0 : i32, i32
  }
  func.func @transform_3(%arg0: i32) -> (i32, i32, i32) {
    %c0_i32 = arith.constant 0 : i32
    %c0_i32_0 = arith.constant 0 : i32
    %c0_i32_1 = arith.constant 0 : i32
    return %arg0, %c0_i32, %c0_i32_0 : i32, i32, i32
  }
  func.func @transform_4(%arg0: i32) -> (i32, i32, i32) {
    %c0_i32 = arith.constant 0 : i32
    %c0_i32_0 = arith.constant 0 : i32
    %c0_i32_1 = arith.constant 0 : i32
    return %arg0, %c0_i32, %c0_i32_0 : i32, i32, i32
  }
  func.func @transform_5(%arg0: i32) -> (i32, i32, i32) {
    %c0_i32 = arith.constant 0 : i32
    %c0_i32_0 = arith.constant 0 : i32
    %c0_i32_1 = arith.constant 0 : i32
    return %arg0, %c0_i32, %c0_i32_0 : i32, i32, i32
  }
}

</mosaic_0001>

<llo_original>
// kernel: silog_loss.1
$region0: #{silog_loss.1}
  #allocation0 [shape = 'u32[]', space=smem, size = 0x4, offset = 0x4, fixed_abs, tag = 'smem constant byte address 0x4 - core index']
  #allocation1 [shape = 'u32[72,128]{1,0:T(1,128)}', space=vmem, size = 0x9000, scoped, tag = 'internal scratch']
  %s0 = inlined_call_operand.hbm [shape: f32[2,1,8,8], index: 0, kind: input, shape index: {}]
  %s1 = inlined_call_operand.vmem [shape: f32[16,8], index: 1, kind: input, shape index: {}]
  %s2 = inlined_call_operand.vmem [shape: f32[8,16], index: 2, kind: input, shape index: {}]
  %s3 = inlined_call_operand.vmem [shape: f32[2,16,16], index: 3, kind: input, shape index: {}]
  %s4 = inlined_call_operand.hbm [shape: f32[1,1,1], index: 4, kind: output, shape index: {0}]
  %s5 = inlined_call_operand.hbm [shape: f32[1,1,1], index: 5, kind: output, shape index: {1}]
  %6 = xla_tuple %s4, %s5
  %s7 = sld [smem:[#allocation0]]
  $region38: #{silog_loss.1} parent=0
    _
  %s9 = ssub.s32 1, %s7
  %s10 = scalar_select 0, %s9, %s7
  $region1: #{silog_loss.1} parent=0
    #allocation2 [shape = 'u8[8192]{0}', space=vmem, size = 0x2000, scoped, tag = 'input window, operand 0, single buffered']
    #allocation3 [shape = 's32[1]{0}', space=sflag, size = 0x4, scoped, tag = 'scoped memory for silog_loss.1']
    #allocation4 [shape = 's32[1]{0}', space=sflag, size = 0x4, scoped, tag = 'scoped memory for silog_loss.1']
    #allocation5 [shape = 'u8[512]{0}', space=vmem, size = 0x400, scoped, tag = 'output window, operand 0, single buffered']
    #allocation6 [shape = 'u8[512]{0}', space=vmem, size = 0x400, scoped, tag = 'output window, operand 1, single buffered']
    #allocation7 [shape = 's32[1]{0}', space=sflag, size = 0x4, scoped, tag = 'scoped memory for silog_loss.1']
    %11 = vsyncpa [#allocation3], 0
    %12 = vsyncpa [#allocation4], 0
    %13 = vsyncpa [#allocation7], 0
    // Predicated region
    $region2: #{silog_loss.1} parent=1 // pred_check
      _
    $region3: #{silog_loss.1} parent=1 // pred_check_branch
      %15 = sbr.rel (0) target = $region5
    $region4: #{silog_loss.1} parent=1 // pred_region
      %17 = vsyncadd [#allocation3], 0
      %s18 = sshll.u32 %s0, 4
      %s19 = int_to_ptr.hbm [resolvable:$true] %s18
      %s20 = sshll.u32 [#allocation2], 4
      %s21 = int_to_ptr.vmem [resolvable:$true] %s20
      %26 = dma.hbm_to_vmem [thread:$0]  %s19, 256, %s21, [#allocation3], 128, 128, 8
    $region5: #{silog_loss.1} parent=1 // pred_fallthru
      _
    // Predicated region
    $region6: #{silog_loss.1} parent=1 // pred_check
      _
    $region7: #{silog_loss.1} parent=1 // pred_check_branch
      %28 = sbr.rel (0) target = $region9
    $region8: #{silog_loss.1} parent=1 // pred_region
      _
    $region9: #{silog_loss.1} parent=1 // pred_fallthru
      _
    // Predicated region
    $region10: #{silog_loss.1} parent=1 // pred_check
      _
    $region11: #{silog_loss.1} parent=1 // pred_check_branch
      %30 = sbr.rel (0) target = $region13
    $region12: #{silog_loss.1} parent=1 // pred_region
      _
    $region13: #{silog_loss.1} parent=1 // pred_fallthru
      _
    // Predicated region
    $region14: #{silog_loss.1} parent=1 // pred_check
      _
    $region15: #{silog_loss.1} parent=1 // pred_check_branch
      %32 = sbr.rel (0) target = $region17
    $region16: #{silog_loss.1} parent=1 // pred_region
      _
    $region17: #{silog_loss.1} parent=1 // pred_fallthru
      _
    // Predicated region
    $region18: #{silog_loss.1} parent=1 // pred_check
      _
    $region19: #{silog_loss.1} parent=1 // pred_check_branch
      %34 = sbr.rel (0) target = $region21
    $region20: #{silog_loss.1} parent=1 // pred_region
      %36 = dma.done [#allocation3], 256
    $region21: #{silog_loss.1} parent=1 // pred_fallthru
      _
    %v37 = vld [vmem:[%s1] sm:$0xff]
    %v38 = vld [vmem:[%s1 + $0x8] sm:$0xff]
    %v39 = vld [vmem:[%s2] sm:$0xff]
    %v40 = vld [vmem:[#allocation2] sm:$0xff]
    %vm41 = vcmask 64512
    %v43 = vsel %vm41, %v37, 0
    %v46 = vsel %vm41, %v38, 0
    %48 = vmatpush.msra.mxu0 0.0
    %49 = vmatpush.msra.mxu0 0.0
    %50 = vmatpush.msra.mxu0 0.0
    %51 = vmatpush.msra.mxu0 0.0
    %52 = vmatpush.msra.mxu0 0.0
    %53 = vmatpush.msra.mxu0 0.0
    %54 = vmatpush.msra.mxu0 0.0
    %55 = vmatpush.msra.mxu0 0.0
    %56 = vmatpush.msra.mxu0 0.0
    %57 = vmatpush.msra.mxu0 0.0
    %58 = vmatpush.msra.mxu0 0.0
    %59 = vmatpush.msra.mxu0 0.0
    %60 = vmatpush.msra.mxu0 0.0
    %61 = vmatpush.msra.mxu0 0.0
    %62 = vmatpush.msra.mxu0 0.0
    %63 = vmatpush.msra.mxu0 %v40
    %64 = vmatmul.f32.gmra.mxu0 %v43
    %v65 = vpop.f32.mrf.mxu0
    %v66 = vadd.f32 0.0, %v65
    %67 = vmatmul.f32.gmra.mxu0 %v46
    %v68 = vpop.f32.mrf.mxu0
    %v69 = vadd.f32 0.0, %v68
    %70 = vdwg.mxu0
    %v72 = vsel %vm41, %v66, 0
    %v75 = vsel %vm41, %v69, 0
    %77 = vmatpush.msra.mxu0 0.0
    %78 = vmatpush.msra.mxu0 0.0
    %79 = vmatpush.msra.mxu0 0.0
    %80 = vmatpush.msra.mxu0 0.0
    %81 = vmatpush.msra.mxu0 0.0
    %82 = vmatpush.msra.mxu0 0.0
    %83 = vmatpush.msra.mxu0 0.0
    %84 = vmatpush.msra.mxu0 0.0
    %85 = vmatpush.msra.mxu0 0.0
    %86 = vmatpush.msra.mxu0 0.0
    %87 = vmatpush.msra.mxu0 0.0
    %88 = vmatpush.msra.mxu0 0.0
    %89 = vmatpush.msra.mxu0 0.0
    %90 = vmatpush.msra.mxu0 0.0
    %91 = vmatpush.msra.mxu0 0.0
    %92 = vmatpush.msra.mxu0 %v39
    %93 = vmatmul.f32.gmra.mxu0 %v72
    %v94 = vpop.f32.mrf.mxu0
    %v95 = vadd.f32 0.0, %v94
    %96 = vmatmul.f32.gmra.mxu0 %v75
    %v97 = vpop.f32.mrf.mxu0
    %v98 = vadd.f32 0.0, %v97
    %99 = vdwg.mxu0
    %v100 = vld [vmem:[%s3] sm:$0xff]
    %v101 = vld [vmem:[%s3 + $0x8] sm:$0xff]
    %v102 = vrcp.pop %v100
    %v103 = vmul.f32 %v100, %v102
    %v104 = vsub.f32 1.0, %v103
    %v105 = vmul.f32 %v102, %v104
    %v106 = vadd.f32 %v102, %v105
    %vm107 = vweird.f32 %v100
    %vm108 = vweird.f32 %v102
    %vm109 = vmor %vm107, %vm108
    %v110 = vsel %vm109, %v102, %v106
    %v111 = vand.u32 2147483647, %v100
    %vm112 = vcmp.eq.f32.partialorder %v111, 8.507059e+37
    %v113 = vand.u32 %v100, 2147483648
    %v114 = vor.u32 1.1754944e-38, %v113
    %v115 = vsel %vm112, %v114, %v110
    %v116 = vmul.f32 %v95, %v115
    %v117 = vrcp.pop %v101
    %v118 = vmul.f32 %v101, %v117
    %v119 = vsub.f32 1.0, %v118
    %v120 = vmul.f32 %v117, %v119
    %v121 = vadd.f32 %v117, %v120
    %vm122 = vweird.f32 %v101
    %vm123 = vweird.f32 %v117
    %vm124 = vmor %vm122, %vm123
    %v125 = vsel %vm124, %v117, %v121
    %v126 = vand.u32 2147483647, %v101
    %vm127 = vcmp.eq.f32.partialorder %v126, 8.507059e+37
    %v128 = vand.u32 %v101, 2147483648
    %v129 = vor.u32 1.1754944e-38, %v128
    %v130 = vsel %vm127, %v129, %v125
    %v131 = vmul.f32 %v98, %v130
    %v132 = vlog2.pop %v116
    %v133 = vmul.f32 %v132, 0.6931472
    %v134 = vlog2.pop %v131
    %v135 = vmul.f32 %v134, 0.6931472
    %vm136 = vcmask 130048
    %v137 = vsel %vm136, %v133, 0.0
    %138 = vadd.xlane.f32.xlu0 %v137
    %v139 = vpop.xlane.xlu0 %138
    %v140 = vsel %vm136, %v135, 0.0
    %141 = vadd.xlane.f32.xlu0 %v140
    %v142 = vpop.xlane.xlu0 %141
    %v143 = vadd.f32 %v139, %v142
    %v144 = vrot.slane %v143, 4
    %v145 = vadd.f32 %v143, %v144
    %v146 = vrot.slane %v145, 2
    %v147 = vadd.f32 %v145, %v146
    %v148 = vrot.slane %v147, 1
    %v149 = vadd.f32 %v147, %v148
    %v150 = vmul.f32 %v149, 0.00390625
    %v151 = vsub.f32 %v133, %v150
    %v152 = vsub.f32 %v135, %v150
    %v153 = vmul.f32 %v151, %v151
    %v154 = vmul.f32 %v152, %v152
    %v155 = vsel %vm136, %v153, 0.0
    %156 = vadd.xlane.f32.xlu0 %v155
    %v157 = vpop.xlane.xlu0 %156
    %v158 = vsel %vm136, %v154, 0.0
    %159 = vadd.xlane.f32.xlu0 %v158
    %v160 = vpop.xlane.xlu0 %159
    %v161 = vadd.f32 %v157, %v160
    %v162 = vrot.slane %v161, 4
    %v163 = vadd.f32 %v161, %v162
    %v164 = vrot.slane %v163, 2
    %v165 = vadd.f32 %v163, %v164
    %v166 = vrot.slane %v165, 1
    %v167 = vadd.f32 %v165, %v166
    %s168 = scalar_lea.vmem [#allocation2], 8
    %v169 = vld [vmem:[%s168] sm:$0xff]
    %170 = vmatpush.msra.mxu0 0.0
    %171 = vmatpush.msra.mxu0 0.0
    %172 = vmatpush.msra.mxu0 0.0
    %173 = vmatpush.msra.mxu0 0.0
    %174 = vmatpush.msra.mxu0 0.0
    %175 = vmatpush.msra.mxu0 0.0
    %176 = vmatpush.msra.mxu0 0.0
    %177 = vmatpush.msra.mxu0 0.0
    %178 = vmatpush.msra.mxu0 0.0
    %179 = vmatpush.msra.mxu0 0.0
    %180 = vmatpush.msra.mxu0 0.0
    %181 = vmatpush.msra.mxu0 0.0
    %182 = vmatpush.msra.mxu0 0.0
    %183 = vmatpush.msra.mxu0 0.0
    %184 = vmatpush.msra.mxu0 0.0
    %185 = vmatpush.msra.mxu0 %v169
    %186 = vmatmul.f32.gmra.mxu0 %v43
    %v187 = vpop.f32.mrf.mxu0
    %v188 = vadd.f32 0.0, %v187
    %189 = vmatmul.f32.gmra.mxu0 %v46
    %v190 = vpop.f32.mrf.mxu0
    %v191 = vadd.f32 0.0, %v190
    %192 = vdwg.mxu0
    %v194 = vsel %vm41, %v188, 0
    %v197 = vsel %vm41, %v191, 0
    %199 = vmatpush.msra.mxu0 0.0
    %200 = vmatpush.msra.mxu0 0.0
    %201 = vmatpush.msra.mxu0 0.0
    %202 = vmatpush.msra.mxu0 0.0
    %203 = vmatpush.msra.mxu0 0.0
    %204 = vmatpush.msra.mxu0 0.0
    %205 = vmatpush.msra.mxu0 0.0
    %206 = vmatpush.msra.mxu0 0.0
    %207 = vmatpush.msra.mxu0 0.0
    %208 = vmatpush.msra.mxu0 0.0
    %209 = vmatpush.msra.mxu0 0.0
    %210 = vmatpush.msra.mxu0 0.0
    %211 = vmatpush.msra.mxu0 0.0
    %212 = vmatpush.msra.mxu0 0.0
    %213 = vmatpush.msra.mxu0 0.0
    %214 = vmatpush.msra.mxu0 %v39
    %215 = vmatmul.f32.gmra.mxu0 %v194
    %v216 = vpop.f32.mrf.mxu0
    %v217 = vadd.f32 0.0, %v216
    %218 = vmatmul.f32.gmra.mxu0 %v197
    %v219 = vpop.f32.mrf.mxu0
    %v220 = vadd.f32 0.0, %v219
    %221 = vdwg.mxu0
    %s222 = scalar_lea.vmem %s3, 16
    %v223 = vld [vmem:[%s222] sm:$0xff]
    %v224 = vld [vmem:[%s222 + $0x8] sm:$0xff]
    %v225 = vrcp.pop %v223
    %v226 = vmul.f32 %v223, %v225
    %v227 = vsub.f32 1.0, %v226
    %v228 = vmul.f32 %v225, %v227
    %v229 = vadd.f32 %v225, %v228
    %vm230 = vweird.f32 %v223
    %vm231 = vweird.f32 %v225
    %vm232 = vmor %vm230, %vm231
    %v233 = vsel %vm232, %v225, %v229
    %v234 = vand.u32 2147483647, %v223
    %vm235 = vcmp.eq.f32.partialorder %v234, 8.507059e+37
    %v236 = vand.u32 %v223, 2147483648
    %v237 = vor.u32 1.1754944e-38, %v236
    %v238 = vsel %vm235, %v237, %v233
    %v239 = vmul.f32 %v217, %v238
    %v240 = vrcp.pop %v224
    %v241 = vmul.f32 %v224, %v240
    %v242 = vsub.f32 1.0, %v241
    %v243 = vmul.f32 %v240, %v242
    %v244 = vadd.f32 %v240, %v243
    %vm245 = vweird.f32 %v224
    %vm246 = vweird.f32 %v240
    %vm247 = vmor %vm245, %vm246
    %v248 = vsel %vm247, %v240, %v244
    %v249 = vand.u32 2147483647, %v224
    %vm250 = vcmp.eq.f32.partialorder %v249, 8.507059e+37
    %v251 = vand.u32 %v224, 2147483648
    %v252 = vor.u32 1.1754944e-38, %v251
    %v253 = vsel %vm250, %v252, %v248
    %v254 = vmul.f32 %v220, %v253
    %v255 = vlog2.pop %v239
    %v256 = vmul.f32 %v255, 0.6931472
    %v257 = vlog2.pop %v254
    %v258 = vmul.f32 %v257, 0.6931472
    %v259 = vsel %vm136, %v256, 0.0
    %260 = vadd.xlane.f32.xlu0 %v259
    %v261 = vpop.xlane.xlu0 %260
    %v262 = vsel %vm136, %v258, 0.0
    %263 = vadd.xlane.f32.xlu0 %v262
    %v264 = vpop.xlane.xlu0 %263
    %v265 = vadd.f32 %v261, %v264
    %v266 = vrot.slane %v265, 4
    %v267 = vadd.f32 %v265, %v266
    %v268 = vrot.slane %v267, 2
    %v269 = vadd.f32 %v267, %v268
    %v270 = vrot.slane %v269, 1
    %v271 = vadd.f32 %v269, %v270
    %v272 = vmul.f32 %v271, 0.00390625
    %v273 = vsub.f32 %v256, %v272
    %v274 = vsub.f32 %v258, %v272
    %v275 = vmul.f32 %v273, %v273
    %v276 = vmul.f32 %v274, %v274
    %v277 = vsel %vm136, %v275, 0.0
    %278 = vadd.xlane.f32.xlu0 %v277
    %v279 = vpop.xlane.xlu0 %278
    %v280 = vsel %vm136, %v276, 0.0
    %281 = vadd.xlane.f32.xlu0 %v280
    %v282 = vpop.xlane.xlu0 %281
    %v283 = vadd.f32 %v279, %v282
    %v284 = vrot.slane %v283, 4
    %v285 = vadd.f32 %v283, %v284
    %v286 = vrot.slane %v285, 2
    %v287 = vadd.f32 %v285, %v286
    %v288 = vrot.slane %v287, 1
    %v289 = vadd.f32 %v287, %v288
    %v290 = vadd.f32 %v150, 0.0
    %v291 = vadd.f32 %v290, %v272
    %v292 = vmul.f32 %v291, 0.5
    %v293 = vadd.f32 %v167, 0.0
    %v294 = vadd.f32 %v293, %v289
    %v295 = vsub.f32 %v150, %v292
    %v296 = vmul.f32 %v295, %v295
    %v297 = vmul.f32 %v296, 256.0
    %v298 = vadd.f32 %v294, %v297
    %v299 = vsub.f32 %v272, %v292
    %v300 = vmul.f32 %v299, %v299
    %v301 = vmul.f32 %v300, 256.0
    %v302 = vadd.f32 %v298, %v301
    %vm303 = vcmask 0
    %304 = vst.msk [vmem:[#allocation5] sm:$0x1] %vm303, %v292
    %305 = vst.msk [vmem:[#allocation6] sm:$0x1] %vm303, %v302
    // Predicated region
    $region22: #{silog_loss.1} parent=1 // pred_check
      _
    $region23: #{silog_loss.1} parent=1 // pred_check_branch
      %307 = sbr.rel (0) target = $region25
    $region24: #{silog_loss.1} parent=1 // pred_region
      %309 = vsyncadd [#allocation4], 0
      %s311 = sshll.u32 [#allocation5], 4
      %s312 = int_to_ptr.vmem [resolvable:$true] %s311
      %s313 = sshll.u32 %s4, 4
      %s314 = int_to_ptr.hbm [resolvable:$true] %s313
      %316 = dma.vmem_to_hbm [thread:$0]  %s312, 16, %s314, [#allocation4]
    $region25: #{silog_loss.1} parent=1 // pred_fallthru
      _
    // Predicated region
    $region26: #{silog_loss.1} parent=1 // pred_check
      _
    $region27: #{silog_loss.1} parent=1 // pred_check_branch
      %318 = sbr.rel (0) target = $region29
    $region28: #{silog_loss.1} parent=1 // pred_region
      %320 = vsyncadd [#allocation7], 0
      %s322 = sshll.u32 [#allocation6], 4
      %s323 = int_to_ptr.vmem [resolvable:$true] %s322
      %s324 = sshll.u32 %s5, 4
      %s325 = int_to_ptr.hbm [resolvable:$true] %s324
      %327 = dma.vmem_to_hbm [thread:$0]  %s323, 16, %s325, [#allocation7]
    $region29: #{silog_loss.1} parent=1 // pred_fallthru
      _
    // Predicated region
    $region30: #{silog_loss.1} parent=1 // pred_check
      _
    $region31: #{silog_loss.1} parent=1 // pred_check_branch
      %329 = sbr.rel (0) target = $region33
    $region32: #{silog_loss.1} parent=1 // pred_region
      %331 = dma.done [#allocation4], 16
    $region33: #{silog_loss.1} parent=1 // pred_fallthru
      _
    // Predicated region
    $region34: #{silog_loss.1} parent=1 // pred_check
      _
    $region35: #{silog_loss.1} parent=1 // pred_check_branch
      %333 = sbr.rel (0) target = $region37
    $region36: #{silog_loss.1} parent=1 // pred_region
      %335 = dma.done [#allocation7], 16
    $region37: #{silog_loss.1} parent=1 // pred_fallthru
      _
    %336 = vsyncpa [#allocation3], 1
    %337 = vsyncpa [#allocation4], 1
    %338 = vsyncpa [#allocation7], 1

</llo_original>
